<compile_context>
chip_gen: v7x
topology: tpu7x:2x2x1
jax: 0.10.0
libtpu: 0.0.40
codegen_flags: <defaults>
</compile_context>

<pallas_src>
import jax
import jax.numpy as jnp
from jax.experimental import pallas as pl
from jax.experimental.pallas import tpu as pltpu


def _make_dice_kernel(C, HW, hw_tile, need_mask):
    """Kernel over refs = (C channel blocks, target block, dice out, a_acc, b_acc)."""

    def kernel(*refs):
        x_refs = refs[:C]
        t_ref = refs[C]
        dice_ref = refs[C + 1]
        a_acc = refs[C + 2]
        b_acc = refs[C + 3]

        j = pl.program_id(1)

        @pl.when(j == 0)
        def _():
            a_acc[...] = jnp.zeros_like(a_acc)
            b_acc[...] = jnp.zeros_like(b_acc)

        if C == 2:
            # softmax(x, axis=C)[1] == sigmoid(x1 - x0); tanh form keeps the
            # transcendental on the EUP slot and avoids a full-width VALU divide.
            d = x_refs[1][...].astype(jnp.float32) - x_refs[0][...].astype(jnp.float32)
            p1 = 0.5 * (jnp.tanh(0.5 * d) + 1.0)
        else:
            xs = [r[...].astype(jnp.float32) for r in x_refs]
            m = xs[0]
            for x in xs[1:]:
                m = jnp.maximum(m, x)
            es = [jnp.exp(x - m) for x in xs]
            s = es[0]
            for e in es[1:]:
                s = s + e
            p1 = es[1] / s

        if need_mask:
            # Zero out padded lanes (only the final spatial tile can be padded;
            # the target is already zero-padded, so masking p1 suffices).
            lane = jax.lax.broadcasted_iota(jnp.int32, p1.shape, 1)
            p1 = jnp.where(lane + j * hw_tile < HW, p1, 0.0)

        t = t_ref[...].astype(jnp.float32)
        a_acc[...] += jnp.sum(p1 * t, axis=-1, keepdims=True)
        b_acc[...] += jnp.sum(p1 + t, axis=-1, keepdims=True)

        @pl.when(j == pl.num_programs(1) - 1)
        def _():
            # Tiny per-sample finalize; exact divide.
            dice_ref[...] = 1.0 - 2.0 * a_acc[...] / b_acc[...]

    return kernel


def dice_loss(output, target):
    """output: [BS, C, H, W], target: [BS, 1, H, W]. Returns scalar mean dice loss."""
    BS, C, H, W = output.shape
    HW = H * W
    itemsize_o = jnp.dtype(output.dtype).itemsize
    itemsize_t = jnp.dtype(target.dtype).itemsize

    # ---- batch tile: prefer a multiple-of-8 divisor of BS giving >=2 parallel
    # grid steps (both v7x TCs busy); otherwise the full batch (legal since the
    # block's second-minor dim then equals the array dim). --------------------
    b_tile = BS
    for d in range(BS // 2, 0, -1):
        if BS % d == 0 and d % 8 == 0:
            b_tile = d
            break
    n_b = BS // b_tile

    # ---- spatial tile: VMEM model per grid step, per (sample, lane) element:
    #   2x double-buffered inputs (C logit blocks + 1 target block)
    #   + ~f32 temporaries (p1 / exp terms).  Keep the estimate under half of
    #   the explicit 32 MiB scoped-VMEM limit. --------------------------------
    bytes_per_elem = 2 * (C * itemsize_o + itemsize_t) + 4 * (C + 1)
    budget = 16 << 20
    max_elems = max(budget // bytes_per_elem, 128)
    hw_cap = max(((max_elems // max(b_tile, 1)) // 128) * 128, 128)

    HW128 = ((HW + 127) // 128) * 128
    if HW128 <= hw_cap:
        hw_tile = HW128                       # whole spatial extent per step
    else:
        hw_tile = hw_cap                      # tile the spatial axis
        # Try to find a dividing tile (>=512 lanes) to avoid an HBM padding copy.
        if HW % hw_tile != 0:
            for ht in range(hw_cap, 511, -128):
                if HW % ht == 0:
                    hw_tile = ht
                    break
    HW_pad = -(-HW // hw_tile) * hw_tile
    n_hw = HW_pad // hw_tile
    need_mask = HW_pad != HW

    # ---- lane-dense layout: channels flattened into the lane axis ------------
    out3 = output.reshape(BS, C, HW)
    tgt2 = target.reshape(BS, HW)
    if need_mask:
        out3 = jnp.pad(out3, ((0, 0), (0, 0), (0, HW_pad - HW)))
        tgt2 = jnp.pad(tgt2, ((0, 0), (0, HW_pad - HW)))
    out2 = out3.reshape(BS, C * HW_pad)       # free reshape when no padding

    # One fully dense (b_tile, hw_tile) block per channel: pass the same HBM
    # array C times; each BlockSpec indexes its own channel's lane region.
    in_specs = [
        pl.BlockSpec((b_tile, hw_tile), lambda i, j, c=c: (i, c * n_hw + j))
        for c in range(C)
    ] + [pl.BlockSpec((b_tile, hw_tile), lambda i, j: (i, j))]

    dice = pl.pallas_call(
        _make_dice_kernel(C, HW, hw_tile, need_mask),
        out_shape=jax.ShapeDtypeStruct((BS, 1), jnp.float32),
        grid_spec=pltpu.PrefetchScalarGridSpec(
            num_scalar_prefetch=0,
            grid=(n_b, n_hw),
            in_specs=in_specs,
            out_specs=pl.BlockSpec((b_tile, 1), lambda i, j: (i, 0)),
            scratch_shapes=[
                pltpu.VMEM((b_tile, 1), jnp.float32),   # a accumulator
                pltpu.VMEM((b_tile, 1), jnp.float32),   # b accumulator
            ],
        ),
        compiler_params=pltpu.CompilerParams(
            # Batch axis has disjoint outputs -> truly parallel (sharded across
            # both TCs on v7x); spatial axis is a reduction -> arbitrary, last.
            dimension_semantics=("parallel", "arbitrary"),
            vmem_limit_bytes=32 * 1024 * 1024,
        ),
    )(*([out2] * C), tgt2)

    return jnp.mean(dice)   # sum of per-sample terms / BS, matching the module


def dice_loss_ref(output, target):
    # Pure-JAX reference mirroring the PyTorch forward exactly.
    p = jax.nn.softmax(output.astype(jnp.float32), axis=1)
    BS = output.shape[0]
    loss = 0.0
    for i in range(BS):
        a = jnp.sum(p[i, 1, :, :] * target[i, 0, :, :])
        b = jnp.sum(p[i, 1, :, :] + target[i, 0, :, :])
        loss = loss + (1.0 - 2.0 * a / b)
    return loss / BS


if __name__ == "__main__":
    # Module defaults: class_num=2; small shapes: batch=2, spatial=16.
    BS, C, H, W = 2, 2, 16, 16
    key = jax.random.PRNGKey(0)
    k1, k2 = jax.random.split(key)
    output = jax.random.normal(k1, (BS, C, H, W), dtype=jnp.float32)
    target = (jax.random.uniform(k2, (BS, 1, H, W)) > 0.5).astype(jnp.float32)

    loss = jax.block_until_ready(dice_loss(output, target))
    ref = jax.block_until_ready(dice_loss_ref(output, target))
    assert jnp.allclose(loss, ref, rtol=1e-5, atol=1e-5), (loss, ref)
    print("KERNEL_OK")
</pallas_src>

<mosaic_0001>
module attributes {stable_mosaic.version = 11 : i64} {
  func.func @kernel(%arg0: i32, %arg1: i32, %arg2: memref<2x256xf32, #tpu.memory_space<vmem>>, %arg3: memref<2x256xf32, #tpu.memory_space<vmem>>, %arg4: memref<2x256xf32, #tpu.memory_space<vmem>>, %arg5: memref<2x1xf32, #tpu.memory_space<vmem>>, %arg6: memref<2x1xf32, #tpu.memory_space<vmem>>, %arg7: memref<2x1xf32, #tpu.memory_space<vmem>>) attributes {dimension_semantics = [#tpu.dimension_semantics<parallel>, #tpu.dimension_semantics<arbitrary>], iteration_bounds = array<i64: 1, 1>, scalar_prefetch = 0 : i64, scratch_operands = 2 : i64, tpu.core_type = #tpu.core_type<tc>, window_params = [{transform_indices = @transform_0, window_bounds = array<i64: 2, 256>}, {transform_indices = @transform_1, window_bounds = array<i64: 2, 256>}, {transform_indices = @transform_2, window_bounds = array<i64: 2, 256>}, {transform_indices = @transform_3, window_bounds = array<i64: 2, 1>}]} {
    %c0_i32 = arith.constant 0 : i32
    %0 = arith.cmpi eq, %arg1, %c0_i32 : i32
    %1 = arith.extui %0 : i1 to i32
    %c0_i32_0 = arith.constant 0 : i32
    %2 = arith.cmpi ne, %1, %c0_i32_0 : i32
    scf.if %2 {
      %cst_20 = arith.constant 0.000000e+00 : f32
      %29 = vector.broadcast %cst_20 : f32 to vector<2x1xf32>
      %c0_21 = arith.constant 0 : index
      %c0_22 = arith.constant 0 : index
      %30 = vector.load %arg6[%c0_21, %c0_22] : memref<2x1xf32, #tpu.memory_space<vmem>>, vector<2x1xf32>
      tpu.vector_store %arg6[%c0_21, %c0_22], %29 {strides = array<i32>} : memref<2x1xf32, #tpu.memory_space<vmem>>, vector<2x1xf32>,
      %cst_23 = arith.constant 0.000000e+00 : f32
      %31 = vector.broadcast %cst_23 : f32 to vector<2x1xf32>
      %c0_24 = arith.constant 0 : index
      %c0_25 = arith.constant 0 : index
      %32 = vector.load %arg7[%c0_24, %c0_25] : memref<2x1xf32, #tpu.memory_space<vmem>>, vector<2x1xf32>
      tpu.vector_store %arg7[%c0_24, %c0_25], %31 {strides = array<i32>} : memref<2x1xf32, #tpu.memory_space<vmem>>, vector<2x1xf32>,
    } else {
    }
    %c0 = arith.constant 0 : index
    %c0_1 = arith.constant 0 : index
    %3 = vector.load %arg3[%c0, %c0_1] : memref<2x256xf32, #tpu.memory_space<vmem>>, vector<2x256xf32>
    %c0_2 = arith.constant 0 : index
    %c0_3 = arith.constant 0 : index
    %4 = vector.load %arg2[%c0_2, %c0_3] : memref<2x256xf32, #tpu.memory_space<vmem>>, vector<2x256xf32>
    %5 = arith.subf %3, %4 : vector<2x256xf32>
    %cst = arith.constant 5.000000e-01 : f32
    %6 = vector.broadcast %cst : f32 to vector<2x256xf32>
    %7 = arith.mulf %6, %5 : vector<2x256xf32>
    %8 = math.tanh %7 : vector<2x256xf32>
    %cst_4 = arith.constant 1.000000e+00 : f32
    %9 = vector.broadcast %cst_4 : f32 to vector<2x256xf32>
    %10 = arith.addf %8, %9 : vector<2x256xf32>
    %cst_5 = arith.constant 5.000000e-01 : f32
    %11 = vector.broadcast %cst_5 : f32 to vector<2x256xf32>
    %12 = arith.mulf %11, %10 : vector<2x256xf32>
    %c0_6 = arith.constant 0 : index
    %c0_7 = arith.constant 0 : index
    %13 = vector.load %arg4[%c0_6, %c0_7] : memref<2x256xf32, #tpu.memory_space<vmem>>, vector<2x256xf32>
    %c0_8 = arith.constant 0 : index
    %c0_9 = arith.constant 0 : index
    %14 = vector.load %arg6[%c0_8, %c0_9] : memref<2x1xf32, #tpu.memory_space<vmem>>, vector<2x1xf32>
    %15 = arith.mulf %12, %13 : vector<2x256xf32>
    %cst_10 = arith.constant dense<0.000000e+00> : vector<2xf32>
    %16 = vector.multi_reduction <add>, %15, %cst_10 [1] : vector<2x256xf32> to vector<2xf32>
    %17 = vector.shape_cast %16 : vector<2xf32> to vector<2x1xf32>
    %18 = arith.addf %14, %17 : vector<2x1xf32>
    %c0_11 = arith.constant 0 : index
    %c0_12 = arith.constant 0 : index
    %19 = vector.load %arg6[%c0_11, %c0_12] : memref<2x1xf32, #tpu.memory_space<vmem>>, vector<2x1xf32>
    tpu.vector_store %arg6[%c0_11, %c0_12], %18 {strides = array<i32>} : memref<2x1xf32, #tpu.memory_space<vmem>>, vector<2x1xf32>,
    %c0_13 = arith.constant 0 : index
    %c0_14 = arith.constant 0 : index
    %20 = vector.load %arg7[%c0_13, %c0_14] : memref<2x1xf32, #tpu.memory_space<vmem>>, vector<2x1xf32>
    %21 = arith.addf %12, %13 : vector<2x256xf32>
    %cst_15 = arith.constant dense<0.000000e+00> : vector<2xf32>
    %22 = vector.multi_reduction <add>, %21, %cst_15 [1] : vector<2x256xf32> to vector<2xf32>
    %23 = vector.shape_cast %22 : vector<2xf32> to vector<2x1xf32>
    %24 = arith.addf %20, %23 : vector<2x1xf32>
    %c0_16 = arith.constant 0 : index
    %c0_17 = arith.constant 0 : index
    %25 = vector.load %arg7[%c0_16, %c0_17] : memref<2x1xf32, #tpu.memory_space<vmem>>, vector<2x1xf32>
    tpu.vector_store %arg7[%c0_16, %c0_17], %24 {strides = array<i32>} : memref<2x1xf32, #tpu.memory_space<vmem>>, vector<2x1xf32>,
    %c0_i32_18 = arith.constant 0 : i32
    %26 = arith.cmpi eq, %arg1, %c0_i32_18 : i32
    %27 = arith.extui %26 : i1 to i32
    %c0_i32_19 = arith.constant 0 : i32
    %28 = arith.cmpi ne, %27, %c0_i32_19 : i32
    scf.if %28 {
      %c0_20 = arith.constant 0 : index
      %c0_21 = arith.constant 0 : index
      %29 = vector.load %arg6[%c0_20, %c0_21] : memref<2x1xf32, #tpu.memory_space<vmem>>, vector<2x1xf32>
      %cst_22 = arith.constant 2.000000e+00 : f32
      %30 = vector.broadcast %cst_22 : f32 to vector<2x1xf32>
      %31 = arith.mulf %30, %29 : vector<2x1xf32>
      %c0_23 = arith.constant 0 : index
      %c0_24 = arith.constant 0 : index
      %32 = vector.load %arg7[%c0_23, %c0_24] : memref<2x1xf32, #tpu.memory_space<vmem>>, vector<2x1xf32>
      %33 = arith.divf %31, %32 : vector<2x1xf32>
      %cst_25 = arith.constant 1.000000e+00 : f32
      %34 = vector.broadcast %cst_25 : f32 to vector<2x1xf32>
      %35 = arith.subf %34, %33 : vector<2x1xf32>
      %c0_26 = arith.constant 0 : index
      %c0_27 = arith.constant 0 : index
      %36 = vector.load %arg5[%c0_26, %c0_27] : memref<2x1xf32, #tpu.memory_space<vmem>>, vector<2x1xf32>
      tpu.vector_store %arg5[%c0_26, %c0_27], %35 {strides = array<i32>} : memref<2x1xf32, #tpu.memory_space<vmem>>, vector<2x1xf32>,
    } else {
    }
    return
  }
  func.func @transform_0(%arg0: i32, %arg1: i32) -> (i32, i32) {
    %c0_i32 = arith.constant 0 : i32
    %0 = arith.addi %c0_i32, %arg1 : i32
    %c0_i32_0 = arith.constant 0 : i32
    return %arg0, %0 : i32, i32
  }
  func.func @transform_1(%arg0: i32, %arg1: i32) -> (i32, i32) {
    %c1_i32 = arith.constant 1 : i32
    %0 = arith.addi %c1_i32, %arg1 : i32
    %c0_i32 = arith.constant 0 : i32
    return %arg0, %0 : i32, i32
  }
  func.func @transform_2(%arg0: i32, %arg1: i32) -> (i32, i32) {
    %c0_i32 = arith.constant 0 : i32
    return %arg0, %arg1 : i32, i32
  }
  func.func @transform_3(%arg0: i32, %arg1: i32) -> (i32, i32) {
    %c0_i32 = arith.constant 0 : i32
    %c0_i32_0 = arith.constant 0 : i32
    return %arg0, %c0_i32 : i32, i32
  }
}

</mosaic_0001>

<llo_original>
// kernel: tpu_custom_call.1
$region0: #{tpu_custom_call.1}
  #allocation0 [shape = 'u32[]', space=smem, size = 0x4, offset = 0x4, fixed_abs, tag = 'smem constant byte address 0x4 - core index']
  #allocation1 [shape = 'u32[144,128]{1,0:T(1,128)}', space=vmem, size = 0x12000, scoped, tag = 'internal scratch']
  #allocation2 [shape = 'f32[2,1]{1,0:T(2,128)}', space=vmem, size = 0x400, scoped, tag = 'scratch operand']
  #allocation3 [shape = 'f32[2,1]{1,0:T(2,128)}', space=vmem, size = 0x400, scoped, tag = 'scratch operand']
  %s0 = inlined_call_operand.hbm [shape: f32[2,512], index: 0, kind: input, shape index: {}]
  %s1 = inlined_call_operand.hbm [shape: f32[2,512], index: 1, kind: input, shape index: {}]
  %s2 = inlined_call_operand.vmem [shape: f32[2,256], index: 2, kind: input, shape index: {}]
  %s3 = inlined_call_operand.vmem [shape: f32[2,1], index: 3, kind: output, shape index: {}]
  %s4 = sld [smem:[#allocation0]]
  $region38: #{tpu_custom_call.1} parent=0
    _
  %s6 = ssub.s32 1, %s4
  %s7 = scalar_select 0, %s6, %s4
  $region1: #{tpu_custom_call.1} parent=0
    #allocation4 [shape = 'u8[2048]{0}', space=vmem, size = 0x800, scoped, tag = 'input window, operand 0, single buffered']
    #allocation5 [shape = 's32[1]{0}', space=sflag, size = 0x4, scoped, tag = 'scoped memory for tpu_custom_call.1']
    #allocation6 [shape = 'u8[2048]{0}', space=vmem, size = 0x800, scoped, tag = 'input window, operand 1, single buffered']
    #allocation7 [shape = 's32[1]{0}', space=sflag, size = 0x4, scoped, tag = 'scoped memory for tpu_custom_call.1']
    %8 = vsyncpa [#allocation5], 0
    %9 = vsyncpa [#allocation7], 0
    // Predicated region
    $region2: #{tpu_custom_call.1} parent=1 // pred_check
      _
    $region3: #{tpu_custom_call.1} parent=1 // pred_check_branch
      %11 = sbr.rel (0) target = $region5
    $region4: #{tpu_custom_call.1} parent=1 // pred_region
      %s13 = ssub.s32 64, 64
      %14 = vsyncadd [#allocation5], %s13
      %s16 = sshll.u32 [#allocation4], 4
      %s17 = int_to_ptr.vmem [resolvable:$true] %s16
      %19 = dma.hbm_to_vmem [thread:$0]  %s0, 64, %s17, [#allocation5]
    $region5: #{tpu_custom_call.1} parent=1 // pred_fallthru
      _
    // Predicated region
    $region6: #{tpu_custom_call.1} parent=1 // pred_check
      _
    $region7: #{tpu_custom_call.1} parent=1 // pred_check_branch
      %21 = sbr.rel (0) target = $region9
    $region8: #{tpu_custom_call.1} parent=1 // pred_region
      %s22 = sadd.s32 0, 1
      %s23 = smul.u32 2, %s22
      %s25 = ssub.s32 64, 64
      %26 = vsyncadd [#allocation7], %s25
      %s27 = smul.addr %s23, 32
      %s28 = scalar_lea.hbm %s1, %s27
      %s30 = sshll.u32 [#allocation6], 4
      %s31 = int_to_ptr.vmem [resolvable:$true] %s30
      %33 = dma.hbm_to_vmem [thread:$0]  %s28, 64, %s31, [#allocation7]
    $region9: #{tpu_custom_call.1} parent=1 // pred_fallthru
      _
    // Predicated region
    $region10: #{tpu_custom_call.1} parent=1 // pred_check
      _
    $region11: #{tpu_custom_call.1} parent=1 // pred_check_branch
      %35 = sbr.rel (0) target = $region13
    $region12: #{tpu_custom_call.1} parent=1 // pred_region
      _
    $region13: #{tpu_custom_call.1} parent=1 // pred_fallthru
      _
    // Predicated region
    $region14: #{tpu_custom_call.1} parent=1 // pred_check
      _
    $region15: #{tpu_custom_call.1} parent=1 // pred_check_branch
      %37 = sbr.rel (0) target = $region17
    $region16: #{tpu_custom_call.1} parent=1 // pred_region
      %38 = dma.done [#allocation5], 64
    $region17: #{tpu_custom_call.1} parent=1 // pred_fallthru
      _
    // Predicated region
    $region18: #{tpu_custom_call.1} parent=1 // pred_check
      _
    $region19: #{tpu_custom_call.1} parent=1 // pred_check_branch
      %40 = sbr.rel (0) target = $region21
    $region20: #{tpu_custom_call.1} parent=1 // pred_region
      %41 = dma.done [#allocation7], 64
    $region21: #{tpu_custom_call.1} parent=1 // pred_fallthru
      _
    %s42 = sadd.s32 0, 1
    %s43 = smul.u32 2, %s42
    %p44 = scmp.eq.s32.totalorder 0, 0
    // Predicated region
    $region22: #{tpu_custom_call.1} parent=1 // pred_check
      %p45 = pneg %p44
    $region23: #{tpu_custom_call.1} parent=1 // pred_check_branch
      %47 = sbr.rel (%p45) target = $region25
    $region24: #{tpu_custom_call.1} parent=1 // pred_region
      %vm48 = vcmask 1024
      %49 = vst.msk [vmem:[#allocation2] sm:$0x3] %vm48, 0.0
      %50 = vst.msk [vmem:[#allocation3] sm:$0x3] %vm48, 0.0
    $region25: #{tpu_custom_call.1} parent=1 // pred_fallthru
      _
    %v51 = vld [vmem:[#allocation6] sm:$0xf]
    %v52 = vld [vmem:[#allocation4] sm:$0xf]
    %v53 = vsub.f32 %v51, %v52
    %v54 = vmul.f32 %v53, 0.5
    %v55 = vtanh.pop %v54
    %v56 = vadd.f32 %v55, 1.0
    %v57 = vmul.f32 %v56, 0.5
    %v58 = vld [vmem:[%s2] sm:$0xf]
    %v59 = vld [vmem:[#allocation2] sm:$0x3]
    %v60 = vmul.f32 %v57, %v58
    %v63 = vunpack.c.l.s4 1983009808
    %v64 = vunpack.c.0.s8 %v63
    %v65 = vlaneseq
    %v66 = vshrl.u32 %v65, 7
    %v67 = vsub.s32 %v64, %v66
    %v68 = vrot.slane %v60, %v67
    %v69 = vcombine.high %v68, %v68
    %vm72 = vcmask 1041408
    %v73 = vsel %vm72, %v68, 0.0
    %v74 = vsel %vm72, %v69, 0.0
    %v75 = vadd.f32 %v73, %v74
    %76 = vadd.xlane.f32.xlu0 %v75
    %v77 = vpop.xlane.xlu0 %76
    %v78 = vadd.f32 %v59, %v77
    %vm79 = vcmask 1024
    %80 = vst.msk [vmem:[#allocation2] sm:$0x3] %vm79, %v78
    %v81 = vld [vmem:[#allocation3] sm:$0x3]
    %v82 = vadd.f32 %v57, %v58
    %v85 = vunpack.c.l.s4 1983009808
    %v86 = vunpack.c.0.s8 %v85
    %v87 = vlaneseq
    %v88 = vshrl.u32 %v87, 7
    %v89 = vsub.s32 %v86, %v88
    %v90 = vrot.slane %v82, %v89
    %v91 = vcombine.high %v90, %v90
    %v94 = vsel %vm72, %v90, 0.0
    %v95 = vsel %vm72, %v91, 0.0
    %v96 = vadd.f32 %v94, %v95
    %97 = vadd.xlane.f32.xlu0 %v96
    %v98 = vpop.xlane.xlu0 %97
    %v99 = vadd.f32 %v81, %v98
    %100 = vst.msk [vmem:[#allocation3] sm:$0x3] %vm79, %v99
    // Predicated region
    $region26: #{tpu_custom_call.1} parent=1 // pred_check
      %p101 = pneg %p44
    $region27: #{tpu_custom_call.1} parent=1 // pred_check_branch
      %103 = sbr.rel (%p101) target = $region29
    $region28: #{tpu_custom_call.1} parent=1 // pred_region
      %v104 = vld [vmem:[#allocation2] sm:$0x3]
      %v105 = vmul.f32 %v104, 2.0
      %v106 = vld [vmem:[#allocation3] sm:$0x3]
      %v107 = vrcp.pop %v106
      %v108 = vmul.f32 %v105, %v107
      %v109 = vsub.f32 1.0, %v108
      %110 = vst.msk [vmem:[%s3] sm:$0x3] %vm79, %v109
    $region29: #{tpu_custom_call.1} parent=1 // pred_fallthru
      _
    // Predicated region
    $region30: #{tpu_custom_call.1} parent=1 // pred_check
      _
    $region31: #{tpu_custom_call.1} parent=1 // pred_check_branch
      %112 = sbr.rel (0) target = $region33
    $region32: #{tpu_custom_call.1} parent=1 // pred_region
      _
    $region33: #{tpu_custom_call.1} parent=1 // pred_fallthru
      _
    // Predicated region
    $region34: #{tpu_custom_call.1} parent=1 // pred_check
      _
    $region35: #{tpu_custom_call.1} parent=1 // pred_check_branch
      %114 = sbr.rel (0) target = $region37
    $region36: #{tpu_custom_call.1} parent=1 // pred_region
      _
    $region37: #{tpu_custom_call.1} parent=1 // pred_fallthru
      _
    %115 = vsyncpa [#allocation5], 1
    %116 = vsyncpa [#allocation7], 1

</llo_original>
